<compile_context>
chip_gen: v7x
topology: tpu7x:2x2x1
jax: 0.10.0
libtpu: 0.0.40
codegen_flags: <defaults>
</compile_context>

<pallas_src>
import functools

import jax
import jax.numpy as jnp
from jax.experimental import pallas as pl
from jax.experimental.pallas import tpu as pltpu

EPS = 1e-5
_LANE = 128
_MAX_TILE_L = 8192  # lanes per spatial tile -> (24, 8192) f32 block = 768 KiB


def _bn_relu_kernel(x_ref, gamma_ref, beta_ref, o_ref,
                    sum_ref, sumsq_ref, scale_ref, shift_ref, *, inv_count):
    p = pl.program_id(0)   # phase: 0 = stats, 1 = apply
    n = pl.program_id(1)   # batch index
    l = pl.program_id(2)   # spatial tile index

    first = (n == 0) & (l == 0)

    @pl.when((p == 0) & first)
    def _init():
        sum_ref[...] = jnp.zeros_like(sum_ref)
        sumsq_ref[...] = jnp.zeros_like(sumsq_ref)

    @pl.when(p == 0)
    def _accumulate():
        x = x_ref[0]                                            # (C, TL)
        sum_ref[...] += jnp.sum(x, axis=-1, keepdims=True)      # XLU reductions
        sumsq_ref[...] += jnp.sum(x * x, axis=-1, keepdims=True)

    @pl.when((p == 1) & first)
    def _fold_scale_shift():
        # Per-channel (C,1) math -- essentially free.
        mean = sum_ref[...] * inv_count
        var = jnp.maximum(sumsq_ref[...] * inv_count - mean * mean, 0.0)
        scale = jax.lax.rsqrt(var + EPS) * gamma_ref[...]
        scale_ref[...] = scale
        shift_ref[...] = beta_ref[...] - mean * scale

    @pl.when(p == 1)
    def _apply():
        x = x_ref[0]
        y = x * scale_ref[...] + shift_ref[...]
        o_ref[0] = jnp.maximum(y, 0.0)


def batchnorm_relu(x_nchw, gamma, beta):
    """x_nchw: (N, C, H, W) float32; gamma/beta: (C,) float32."""
    N, C, H, W = x_nchw.shape
    HW = H * W
    inv_count = 1.0 / float(N * HW)   # true element count (excludes lane padding)

    # Lane-dense padded spatial length and tile size (multiple of 128).
    HW_pad = ((HW + _LANE - 1) // _LANE) * _LANE
    if HW_pad <= _MAX_TILE_L:
        TL = HW_pad
    else:
        TL = _MAX_TILE_L
        HW_pad = ((HW + TL - 1) // TL) * TL
    nL = HW_pad // TL

    x3 = x_nchw.reshape(N, C, HW)                   # free reshape, no transpose
    if HW_pad != HW:
        # zero padding -> contributes 0 to sum and sumsq, sliced off on output
        x3 = jnp.pad(x3, ((0, 0), (0, 0), (0, HW_pad - HW)))
    gamma_c1 = gamma.reshape(C, 1).astype(x3.dtype)
    beta_c1 = beta.reshape(C, 1).astype(x3.dtype)

    kernel = functools.partial(_bn_relu_kernel, inv_count=inv_count)

    out = pl.pallas_call(
        kernel,
        out_shape=jax.ShapeDtypeStruct((N, C, HW_pad), x3.dtype),
        grid_spec=pltpu.PrefetchScalarGridSpec(
            num_scalar_prefetch=0,
            grid=(2, N, nL),
            in_specs=[
                pl.BlockSpec((1, C, TL), lambda p, n, l: (n, 0, l)),
                pl.BlockSpec((C, 1), lambda p, n, l: (0, 0)),
                pl.BlockSpec((C, 1), lambda p, n, l: (0, 0)),
            ],
            # During phase 0 the output block index stays (0, 0, 0), so nothing
            # is written back; phase 1 writes every block exactly once.
            out_specs=pl.BlockSpec((1, C, TL), lambda p, n, l: (p * n, 0, p * l)),
            scratch_shapes=[
                pltpu.VMEM((C, 1), jnp.float32),   # per-channel sum
                pltpu.VMEM((C, 1), jnp.float32),   # per-channel sum of squares
                pltpu.VMEM((C, 1), jnp.float32),   # scale = gamma * rsqrt(var+eps)
                pltpu.VMEM((C, 1), jnp.float32),   # shift = beta - mean*scale
            ],
        ),
        compiler_params=pltpu.CompilerParams(
            dimension_semantics=("arbitrary", "arbitrary", "arbitrary"),
            vmem_limit_bytes=32 * 1024 * 1024,
        ),
    )(x3, gamma_c1, beta_c1)

    return out[:, :, :HW].reshape(N, C, H, W)


def _reference(x, gamma, beta):
    mean = jnp.mean(x, axis=(0, 2, 3), keepdims=True)
    var = jnp.mean((x - mean) ** 2, axis=(0, 2, 3), keepdims=True)
    y = (x - mean) / jnp.sqrt(var + EPS) * gamma.reshape(1, -1, 1, 1) \
        + beta.reshape(1, -1, 1, 1)
    return jnp.maximum(y, 0.0)


if __name__ == "__main__":
    key = jax.random.PRNGKey(0)
    C = 24
    bn_relu = jax.jit(batchnorm_relu)

    # Shape from the original module: (1, 24, 28, 28); default BN params.
    k1, k2, k3, k4 = jax.random.split(key, 4)
    x = jax.random.normal(k1, (1, C, 28, 28), dtype=jnp.float32)
    gamma = jnp.ones((C,), dtype=jnp.float32)
    beta = jnp.zeros((C,), dtype=jnp.float32)
    out = bn_relu(x, gamma, beta)
    jax.block_until_ready(out)
    ref = _reference(x, gamma, beta)
    assert out.shape == x.shape
    assert jnp.max(jnp.abs(out - ref)) < 1e-4

    # Second check: batch > 1 and non-trivial affine params (exercises the
    # N-accumulation grid axis and the folded scale/shift path).
    x2 = jax.random.normal(k2, (2, C, 28, 28), dtype=jnp.float32)
    gamma2 = 1.0 + 0.1 * jax.random.normal(k3, (C,), dtype=jnp.float32)
    beta2 = 0.1 * jax.random.normal(k4, (C,), dtype=jnp.float32)
    out2 = bn_relu(x2, gamma2, beta2)
    jax.block_until_ready(out2)
    ref2 = _reference(x2, gamma2, beta2)
    assert jnp.max(jnp.abs(out2 - ref2)) < 1e-4

    print("KERNEL_OK")
</pallas_src>

<mosaic_0001>
module attributes {stable_mosaic.version = 11 : i64} {
  func.func @_bn_relu_kernel(%arg0: i32, %arg1: i32, %arg2: i32, %arg3: memref<1x24x896xf32, #tpu.memory_space<vmem>>, %arg4: memref<24x1xf32, #tpu.memory_space<vmem>>, %arg5: memref<24x1xf32, #tpu.memory_space<vmem>>, %arg6: memref<1x24x896xf32, #tpu.memory_space<vmem>>, %arg7: memref<24x1xf32, #tpu.memory_space<vmem>>, %arg8: memref<24x1xf32, #tpu.memory_space<vmem>>, %arg9: memref<24x1xf32, #tpu.memory_space<vmem>>, %arg10: memref<24x1xf32, #tpu.memory_space<vmem>>) attributes {dimension_semantics = [#tpu.dimension_semantics<arbitrary>, #tpu.dimension_semantics<arbitrary>, #tpu.dimension_semantics<arbitrary>], iteration_bounds = array<i64: 2, 1, 1>, scalar_prefetch = 0 : i64, scratch_operands = 4 : i64, tpu.core_type = #tpu.core_type<tc>, window_params = [{transform_indices = @transform_0, window_bounds = array<i64: 1, 24, 896>}, {pipeline_mode = #tpu.pipeline_mode<synchronous>, transform_indices = @transform_1, window_bounds = array<i64: 24, 1>}, {pipeline_mode = #tpu.pipeline_mode<synchronous>, transform_indices = @transform_2, window_bounds = array<i64: 24, 1>}, {transform_indices = @transform_3, window_bounds = array<i64: 1, 24, 896>}]} {
    %c0_i32 = arith.constant 0 : i32
    %0 = arith.cmpi eq, %arg1, %c0_i32 : i32
    %c0_i32_0 = arith.constant 0 : i32
    %1 = arith.cmpi eq, %arg2, %c0_i32_0 : i32
    %2 = arith.andi %0, %1 : i1
    %c0_i32_1 = arith.constant 0 : i32
    %3 = arith.cmpi eq, %arg0, %c0_i32_1 : i32
    %4 = arith.andi %3, %2 : i1
    %5 = arith.extui %4 : i1 to i32
    %c0_i32_2 = arith.constant 0 : i32
    %6 = arith.cmpi ne, %5, %c0_i32_2 : i32
    scf.if %6 {
      %cst = arith.constant 0.000000e+00 : f32
      %17 = vector.broadcast %cst : f32 to vector<24x1xf32>
      %c0 = arith.constant 0 : index
      %c0_8 = arith.constant 0 : index
      %18 = vector.load %arg7[%c0, %c0_8] : memref<24x1xf32, #tpu.memory_space<vmem>>, vector<24x1xf32>
      tpu.vector_store %arg7[%c0, %c0_8], %17 {strides = array<i32>} : memref<24x1xf32, #tpu.memory_space<vmem>>, vector<24x1xf32>,
      %cst_9 = arith.constant 0.000000e+00 : f32
      %19 = vector.broadcast %cst_9 : f32 to vector<24x1xf32>
      %c0_10 = arith.constant 0 : index
      %c0_11 = arith.constant 0 : index
      %20 = vector.load %arg8[%c0_10, %c0_11] : memref<24x1xf32, #tpu.memory_space<vmem>>, vector<24x1xf32>
      tpu.vector_store %arg8[%c0_10, %c0_11], %19 {strides = array<i32>} : memref<24x1xf32, #tpu.memory_space<vmem>>, vector<24x1xf32>,
    } else {
    }
    %c0_i32_3 = arith.constant 0 : i32
    %7 = arith.cmpi eq, %arg0, %c0_i32_3 : i32
    %8 = arith.extui %7 : i1 to i32
    %c0_i32_4 = arith.constant 0 : i32
    %9 = arith.cmpi ne, %8, %c0_i32_4 : i32
    scf.if %9 {
      %c0 = arith.constant 0 : index
      %c0_8 = arith.constant 0 : index
      %c0_9 = arith.constant 0 : index
      %17 = vector.load %arg3[%c0, %c0_8, %c0_9] : memref<1x24x896xf32, #tpu.memory_space<vmem>>, vector<1x24x896xf32>
      %18 = vector.shape_cast %17 : vector<1x24x896xf32> to vector<24x896xf32>
      %c0_10 = arith.constant 0 : index
      %c0_11 = arith.constant 0 : index
      %19 = vector.load %arg7[%c0_10, %c0_11] : memref<24x1xf32, #tpu.memory_space<vmem>>, vector<24x1xf32>
      %cst = arith.constant dense<0.000000e+00> : vector<24xf32>
      %20 = vector.multi_reduction <add>, %18, %cst [1] : vector<24x896xf32> to vector<24xf32>
      %21 = vector.shape_cast %20 : vector<24xf32> to vector<24x1xf32>
      %22 = arith.addf %19, %21 : vector<24x1xf32>
      %c0_12 = arith.constant 0 : index
      %c0_13 = arith.constant 0 : index
      %23 = vector.load %arg7[%c0_12, %c0_13] : memref<24x1xf32, #tpu.memory_space<vmem>>, vector<24x1xf32>
      tpu.vector_store %arg7[%c0_12, %c0_13], %22 {strides = array<i32>} : memref<24x1xf32, #tpu.memory_space<vmem>>, vector<24x1xf32>,
      %c0_14 = arith.constant 0 : index
      %c0_15 = arith.constant 0 : index
      %24 = vector.load %arg8[%c0_14, %c0_15] : memref<24x1xf32, #tpu.memory_space<vmem>>, vector<24x1xf32>
      %25 = arith.mulf %18, %18 : vector<24x896xf32>
      %cst_16 = arith.constant dense<0.000000e+00> : vector<24xf32>
      %26 = vector.multi_reduction <add>, %25, %cst_16 [1] : vector<24x896xf32> to vector<24xf32>
      %27 = vector.shape_cast %26 : vector<24xf32> to vector<24x1xf32>
      %28 = arith.addf %24, %27 : vector<24x1xf32>
      %c0_17 = arith.constant 0 : index
      %c0_18 = arith.constant 0 : index
      %29 = vector.load %arg8[%c0_17, %c0_18] : memref<24x1xf32, #tpu.memory_space<vmem>>, vector<24x1xf32>
      tpu.vector_store %arg8[%c0_17, %c0_18], %28 {strides = array<i32>} : memref<24x1xf32, #tpu.memory_space<vmem>>, vector<24x1xf32>,
    } else {
    }
    %c1_i32 = arith.constant 1 : i32
    %10 = arith.cmpi eq, %arg0, %c1_i32 : i32
    %11 = arith.andi %10, %2 : i1
    %12 = arith.extui %11 : i1 to i32
    %c0_i32_5 = arith.constant 0 : i32
    %13 = arith.cmpi ne, %12, %c0_i32_5 : i32
    scf.if %13 {
      %c0 = arith.constant 0 : index
      %c0_8 = arith.constant 0 : index
      %17 = vector.load %arg7[%c0, %c0_8] : memref<24x1xf32, #tpu.memory_space<vmem>>, vector<24x1xf32>
      %cst = arith.constant 0.00127551018 : f32
      %18 = vector.broadcast %cst : f32 to vector<24x1xf32>
      %19 = arith.mulf %17, %18 : vector<24x1xf32>
      %c0_9 = arith.constant 0 : index
      %c0_10 = arith.constant 0 : index
      %20 = vector.load %arg8[%c0_9, %c0_10] : memref<24x1xf32, #tpu.memory_space<vmem>>, vector<24x1xf32>
      %cst_11 = arith.constant 0.00127551018 : f32
      %21 = vector.broadcast %cst_11 : f32 to vector<24x1xf32>
      %22 = arith.mulf %20, %21 : vector<24x1xf32>
      %23 = arith.mulf %19, %19 : vector<24x1xf32>
      %24 = arith.subf %22, %23 : vector<24x1xf32>
      %cst_12 = arith.constant 0.000000e+00 : f32
      %25 = vector.broadcast %cst_12 : f32 to vector<24x1xf32>
      %26 = arith.maximumf %24, %25 : vector<24x1xf32>
      %cst_13 = arith.constant 9.99999974E-6 : f32
      %27 = vector.broadcast %cst_13 : f32 to vector<24x1xf32>
      %28 = arith.addf %26, %27 : vector<24x1xf32>
      %29 = math.rsqrt %28 : vector<24x1xf32>
      %c0_14 = arith.constant 0 : index
      %c0_15 = arith.constant 0 : index
      %30 = vector.load %arg4[%c0_14, %c0_15] : memref<24x1xf32, #tpu.memory_space<vmem>>, vector<24x1xf32>
      %31 = arith.mulf %29, %30 : vector<24x1xf32>
      %c0_16 = arith.constant 0 : index
      %c0_17 = arith.constant 0 : index
      %32 = vector.load %arg9[%c0_16, %c0_17] : memref<24x1xf32, #tpu.memory_space<vmem>>, vector<24x1xf32>
      tpu.vector_store %arg9[%c0_16, %c0_17], %31 {strides = array<i32>} : memref<24x1xf32, #tpu.memory_space<vmem>>, vector<24x1xf32>,
      %c0_18 = arith.constant 0 : index
      %c0_19 = arith.constant 0 : index
      %33 = vector.load %arg5[%c0_18, %c0_19] : memref<24x1xf32, #tpu.memory_space<vmem>>, vector<24x1xf32>
      %34 = arith.mulf %19, %31 : vector<24x1xf32>
      %35 = arith.subf %33, %34 : vector<24x1xf32>
      %c0_20 = arith.constant 0 : index
      %c0_21 = arith.constant 0 : index
      %36 = vector.load %arg10[%c0_20, %c0_21] : memref<24x1xf32, #tpu.memory_space<vmem>>, vector<24x1xf32>
      tpu.vector_store %arg10[%c0_20, %c0_21], %35 {strides = array<i32>} : memref<24x1xf32, #tpu.memory_space<vmem>>, vector<24x1xf32>,
    } else {
    }
    %c1_i32_6 = arith.constant 1 : i32
    %14 = arith.cmpi eq, %arg0, %c1_i32_6 : i32
    %15 = arith.extui %14 : i1 to i32
    %c0_i32_7 = arith.constant 0 : i32
    %16 = arith.cmpi ne, %15, %c0_i32_7 : i32
    scf.if %16 {
      %c0 = arith.constant 0 : index
      %c0_8 = arith.constant 0 : index
      %c0_9 = arith.constant 0 : index
      %17 = vector.load %arg3[%c0, %c0_8, %c0_9] : memref<1x24x896xf32, #tpu.memory_space<vmem>>, vector<1x24x896xf32>
      %18 = vector.shape_cast %17 : vector<1x24x896xf32> to vector<24x896xf32>
      %c0_10 = arith.constant 0 : index
      %c0_11 = arith.constant 0 : index
      %19 = vector.load %arg9[%c0_10, %c0_11] : memref<24x1xf32, #tpu.memory_space<vmem>>, vector<24x1xf32>
      %20 = vector.broadcast %19 : vector<24x1xf32> to vector<24x896xf32>
      %21 = arith.mulf %18, %20 : vector<24x896xf32>
      %c0_12 = arith.constant 0 : index
      %c0_13 = arith.constant 0 : index
      %22 = vector.load %arg10[%c0_12, %c0_13] : memref<24x1xf32, #tpu.memory_space<vmem>>, vector<24x1xf32>
      %23 = vector.broadcast %22 : vector<24x1xf32> to vector<24x896xf32>
      %24 = arith.addf %21, %23 : vector<24x896xf32>
      %cst = arith.constant 0.000000e+00 : f32
      %25 = vector.broadcast %cst : f32 to vector<24x896xf32>
      %26 = arith.maximumf %24, %25 : vector<24x896xf32>
      %c0_14 = arith.constant 0 : index
      %c0_15 = arith.constant 0 : index
      %c0_16 = arith.constant 0 : index
      %27 = vector.load %arg6[%c0_14, %c0_15, %c0_16] : memref<1x24x896xf32, #tpu.memory_space<vmem>>, vector<1x24x896xf32>
      %28 = vector.shape_cast %27 : vector<1x24x896xf32> to vector<24x896xf32>
      %29 = vector.shape_cast %26 : vector<24x896xf32> to vector<1x24x896xf32>
      tpu.vector_store %arg6[%c0_14, %c0_15, %c0_16], %29 {strides = array<i32>} : memref<1x24x896xf32, #tpu.memory_space<vmem>>, vector<1x24x896xf32>,
    } else {
    }
    return
  }
  func.func @transform_0(%arg0: i32, %arg1: i32, %arg2: i32) -> (i32, i32, i32) {
    %c0_i32 = arith.constant 0 : i32
    %c0_i32_0 = arith.constant 0 : i32
    return %arg1, %c0_i32, %arg2 : i32, i32, i32
  }
  func.func @transform_1(%arg0: i32, %arg1: i32, %arg2: i32) -> (i32, i32) {
    %c0_i32 = arith.constant 0 : i32
    %c0_i32_0 = arith.constant 0 : i32
    %c0_i32_1 = arith.constant 0 : i32
    return %c0_i32, %c0_i32_0 : i32, i32
  }
  func.func @transform_2(%arg0: i32, %arg1: i32, %arg2: i32) -> (i32, i32) {
    %c0_i32 = arith.constant 0 : i32
    %c0_i32_0 = arith.constant 0 : i32
    %c0_i32_1 = arith.constant 0 : i32
    return %c0_i32, %c0_i32_0 : i32, i32
  }
  func.func @transform_3(%arg0: i32, %arg1: i32, %arg2: i32) -> (i32, i32, i32) {
    %0 = arith.muli %arg0, %arg1 : i32
    %1 = arith.muli %arg0, %arg2 : i32
    %c0_i32 = arith.constant 0 : i32
    %c0_i32_0 = arith.constant 0 : i32
    return %0, %c0_i32, %1 : i32, i32, i32
  }
}

</mosaic_0001>

<llo_original>
// kernel: batchnorm_relu.1
$region0: #{batchnorm_relu.1}
  #allocation0 [shape = 'u32[]', space=smem, size = 0x4, offset = 0x4, fixed_abs, tag = 'smem constant byte address 0x4 - core index']
  #allocation1 [shape = 'u32[144,128]{1,0:T(1,128)}', space=vmem, size = 0x12000, scoped, tag = 'internal scratch']
  #allocation2 [shape = 'f32[24,1]{1,0:T(8,128)}', space=vmem, size = 0x3000, scoped, tag = 'scratch operand']
  #allocation3 [shape = 'f32[24,1]{1,0:T(8,128)}', space=vmem, size = 0x3000, scoped, tag = 'scratch operand']
  #allocation4 [shape = 'f32[24,1]{1,0:T(8,128)}', space=vmem, size = 0x3000, scoped, tag = 'scratch operand']
  #allocation5 [shape = 'f32[24,1]{1,0:T(8,128)}', space=vmem, size = 0x3000, scoped, tag = 'scratch operand']
  %s0 = inlined_call_operand.vmem [shape: f32[1,24,896], index: 0, kind: input, shape index: {}]
  %s1 = inlined_call_operand.vmem [shape: f32[24,1], index: 1, kind: input, shape index: {}]
  %s2 = inlined_call_operand.vmem [shape: f32[24,1], index: 2, kind: input, shape index: {}]
  %s3 = inlined_call_operand.vmem [shape: f32[1,24,896], index: 3, kind: output, shape index: {}]
  %s4 = sld [smem:[#allocation0]]
  $region61: #{batchnorm_relu.1} parent=0
    _
  %s6 = ssub.s32 1, %s4
  %s7 = scalar_select 0, %s6, %s4
  loop: start=0, step=1, limit=4
  $region2: #{batchnorm_relu.1} parent=0 // loop_pre_header
    _
  $region3: #{batchnorm_relu.1} parent=0 // loop_header
    %s9 = sphi 0, %s13
    %p10 = scmp.ge.s32.totalorder %s9, 4
    %s16 = sphi 0, %s35
    %s17 = sphi 0, %s31
    %s18 = sphi 0, %s27
    %s19 = sphi 0, %s16
    %s20 = sphi 0, %s17
    %s21 = sphi 0, %s18
    %s22 = sphi 0, %s19
    %s23 = sphi 0, %s20
    %s24 = sphi 0, %s21
    %s40 = sphi 0, %s42
    %s43 = sphi 0, %s40
    %s44 = sphi 0, %s43
    %s60 = sphi 0, %s44
    %s64 = sphi 0, %s64
    %s66 = sphi 0, %s64
    %s67 = sphi 0, %s66
    %s81 = sphi 0, %s67
    %s85 = sphi 0, %s85
    %s87 = sphi 0, %s85
    %s88 = sphi 0, %s87
    %s102 = sphi 0, %s88
    %s114 = sphi 0, %s116
    %s117 = sphi 0, %s114
    %s118 = sphi 0, %s117
    %s134 = sphi 0, %s118
  $region4: #{batchnorm_relu.1} parent=0 // loop_header_branch
    %12 = sbr.rel (%p10) target = $region8
  $region5: #{batchnorm_relu.1} parent=0 // loop_body
    %s14 = ssub.s32 %s9, 1
    %s15 = ssub.s32 %s9, 2
    %s25 = sadd.s32 1, %s18
    %p26 = scmp.ge.s32.totalorder %s25, 1
    %s27 = scalar_select %p26, 0, %s25
    %s28 = sadd.s32 1, %s17
    %s29 = scalar_select %p26, %s28, %s17
    %p30 = scmp.ge.s32.totalorder %s29, 1
    %s31 = scalar_select %p30, 0, %s29
    %s32 = sadd.s32 1, %s16
    %s33 = scalar_select %p30, %s32, %s16
    %p34 = scmp.ge.s32.totalorder %s33, 2
    %s35 = scalar_select %p34, 0, %s33
    %s36 = ssub.s32 %s17, %s31
    %s37 = ssub.s32 %s18, %s27
    %s38 = sor.u32 %s36, %s37
    %p39 = scmp.eq.s32.totalorder %s38, 0
    %s41 = sadd.s32 %s40, 1
    %s42 = scalar_select %p39, %s40, %s41
    %p45 = pneg %p39
    %p46 = scmp.eq.s32.totalorder %s9, 1
    %p47 = por %p45, %p46
    %p48 = scmp.ne.s32.totalorder %s40, %s43
    %p49 = scmp.eq.s32.totalorder %s9, 0
    %p50 = por %p48, %p49
    %p51 = scmp.ne.s32.totalorder %s40, %s43
    %p52 = scmp.eq.s32.totalorder %s14, 1
    %p53 = por %p51, %p52
    %p54 = scmp.ne.s32.totalorder %s43, %s44
    %p55 = scmp.eq.s32.totalorder %s14, 0
    %p56 = por %p54, %p55
    %p57 = scmp.ne.s32.totalorder %s43, %s44
    %p58 = scmp.eq.s32.totalorder %s15, 1
    %p59 = por %p57, %p58
    %p61 = scmp.ne.s32.totalorder %s44, %s60
    %p62 = scmp.eq.s32.totalorder %s15, 0
    %p63 = por %p61, %p62
    %s65 = sadd.s32 %s64, 1
    %p68 = scmp.eq.s32.totalorder %s9, 1
    %p69 = scmp.ne.s32.totalorder %s64, %s66
    %p70 = scmp.eq.s32.totalorder %s9, 0
    %p71 = por %p69, %p70
    %p72 = scmp.ne.s32.totalorder %s64, %s66
    %p73 = scmp.eq.s32.totalorder %s14, 1
    %p74 = por %p72, %p73
    %p75 = scmp.ne.s32.totalorder %s66, %s67
    %p76 = scmp.eq.s32.totalorder %s14, 0
    %p77 = por %p75, %p76
    %p78 = scmp.ne.s32.totalorder %s66, %s67
    %p79 = scmp.eq.s32.totalorder %s15, 1
    %p80 = por %p78, %p79
    %p82 = scmp.ne.s32.totalorder %s67, %s81
    %p83 = scmp.eq.s32.totalorder %s15, 0
    %p84 = por %p82, %p83
    %s86 = sadd.s32 %s85, 1
    %p89 = scmp.eq.s32.totalorder %s9, 1
    %p90 = scmp.ne.s32.totalorder %s85, %s87
    %p91 = scmp.eq.s32.totalorder %s9, 0
    %p92 = por %p90, %p91
    %p93 = scmp.ne.s32.totalorder %s85, %s87
    %p94 = scmp.eq.s32.totalorder %s14, 1
    %p95 = por %p93, %p94
    %p96 = scmp.ne.s32.totalorder %s87, %s88
    %p97 = scmp.eq.s32.totalorder %s14, 0
    %p98 = por %p96, %p97
    %p99 = scmp.ne.s32.totalorder %s87, %s88
    %p100 = scmp.eq.s32.totalorder %s15, 1
    %p101 = por %p99, %p100
    %p103 = scmp.ne.s32.totalorder %s88, %s102
    %p104 = scmp.eq.s32.totalorder %s15, 0
    %p105 = por %p103, %p104
    %s106 = smul.u32 %s16, %s17
    %s107 = smul.u32 %s16, %s18
    %s108 = smul.u32 %s35, %s31
    %s109 = smul.u32 %s35, %s27
    %s110 = ssub.s32 %s106, %s108
    %s111 = ssub.s32 %s107, %s109
    %s112 = sor.u32 %s110, %s111
    %p113 = scmp.eq.s32.totalorder %s112, 0
    %s115 = sadd.s32 %s114, 1
    %s116 = scalar_select %p113, %s114, %s115
    %p119 = pneg %p113
    %p120 = scmp.eq.s32.totalorder %s9, 1
    %p121 = por %p119, %p120
    %p122 = scmp.ne.s32.totalorder %s114, %s117
    %p123 = scmp.eq.s32.totalorder %s9, 0
    %p124 = por %p122, %p123
    %p125 = scmp.ne.s32.totalorder %s114, %s117
    %p126 = scmp.eq.s32.totalorder %s14, 1
    %p127 = por %p125, %p126
    %p128 = scmp.ne.s32.totalorder %s117, %s118
    %p129 = scmp.eq.s32.totalorder %s14, 0
    %p130 = por %p128, %p129
    %p131 = scmp.ne.s32.totalorder %s117, %s118
    %p132 = scmp.eq.s32.totalorder %s15, 1
    %p133 = por %p131, %p132
    %p135 = scmp.ne.s32.totalorder %s118, %s134
    %p136 = scmp.eq.s32.totalorder %s15, 0
    %p137 = por %p135, %p136
    %p138 = scmp.le.s32.totalorder 1, %s9
    %p139 = scmp.lt.s32.totalorder %s9, 3
    %p140 = pnand %p138, %p139
    %p141 = pneg %p140
    // Predicated region
    $region9: #{batchnorm_relu.1} parent=5 // pred_check
      _
    $region10: #{batchnorm_relu.1} parent=5 // pred_check_branch
      %143 = sbr.rel (%p140) target = $region12
    $region11: #{batchnorm_relu.1} parent=5 // pred_region
      %s144 = ssub.s32 %s9, 1
      // Predicated region
      $region13: #{batchnorm_relu.1} parent=11 // pred_check
        %p145 = pneg %p56
      $region14: #{batchnorm_relu.1} parent=11 // pred_check_branch
        %147 = sbr.rel (%p145) target = $region16
      $region15: #{batchnorm_relu.1} parent=11 // pred_region
        %s148 = smul.u32 7, %s21
        %p149 = scmp.lt.s32.totalorder %s20, 0
        %s150 = scalar_select %p149, %s20, 0
        %p151 = scmp.lt.s32.totalorder %s148, 6
        %s152 = scalar_select %p151, %s148, 6
        %s153 = smul.addr %s150, 21
        %s154 = sadd.s32 %s152, %s153
        %s155 = smul.addr %s154, 8
        %s156 = scalar_lea.vmem %s0, %s155
        %s157 = smul.u32 7, %s21
      $region16: #{batchnorm_relu.1} parent=11 // pred_fallthru
        _
      // Predicated region
      $region17: #{batchnorm_relu.1} parent=11 // pred_check
        %p158 = pneg %p77
      $region18: #{batchnorm_relu.1} parent=11 // pred_check_branch
        %160 = sbr.rel (%p158) target = $region20
      $region19: #{batchnorm_relu.1} parent=11 // pred_region
        _
      $region20: #{batchnorm_relu.1} parent=11 // pred_fallthru
        _
      // Predicated region
      $region21: #{batchnorm_relu.1} parent=11 // pred_check
        %p161 = pneg %p98
      $region22: #{batchnorm_relu.1} parent=11 // pred_check_branch
        %163 = sbr.rel (%p161) target = $region24
      $region23: #{batchnorm_relu.1} parent=11 // pred_region
        _
      $region24: #{batchnorm_relu.1} parent=11 // pred_fallthru
        _
    $region12: #{batchnorm_relu.1} parent=5 // pred_fallthru
      _
    %p164 = scmp.lt.s32.totalorder %s9, 2
    // Predicated region
    $region25: #{batchnorm_relu.1} parent=5 // pred_check
      %p165 = pneg %p164
    $region26: #{batchnorm_relu.1} parent=5 // pred_check_branch
      %167 = sbr.rel (%p165) target = $region28
    $region27: #{batchnorm_relu.1} parent=5 // pred_region
      _
    $region28: #{batchnorm_relu.1} parent=5 // pred_fallthru
      _
    %p168 = scmp.le.s32.totalorder 1, %s9
    %p169 = scmp.lt.s32.totalorder %s9, 3
    %p170 = pnand %p168, %p169
    %p171 = pneg %p170
    // Predicated region
    $region29: #{batchnorm_relu.1} parent=5 // pred_check
      _
    $region30: #{batchnorm_relu.1} parent=5 // pred_check_branch
      %173 = sbr.rel (%p170) target = $region32
    $region31: #{batchnorm_relu.1} parent=5 // pred_region
      %s174 = ssub.s32 %s9, 1
      %s175 = smul.u32 7, %s21
      %p176 = scmp.lt.s32.totalorder %s20, 0
      %s177 = scalar_select %p176, %s20, 0
      %p178 = scmp.lt.s32.totalorder %s175, 6
      %s179 = scalar_select %p178, %s175, 6
      %s180 = smul.addr %s177, 21
      %s181 = sadd.s32 %s179, %s180
      %s182 = smul.addr %s181, 8
      %s183 = scalar_lea.vmem %s0, %s182
      %p184 = pneg %p56
      %p185 = pneg %p53
      %p186 = pneg %p77
      %p187 = pneg %p74
      %p188 = pneg %p98
      %p189 = pneg %p95
      %p190 = pneg %p130
      %p191 = pneg %p127
      %s192 = smul.u32 %s19, %s20
      %s193 = smul.u32 %s19, %s21
      %s194 = smul.u32 7, %s193
      %p195 = scmp.lt.s32.totalorder %s192, 0
      %s196 = scalar_select %p195, %s192, 0
      %p197 = scmp.lt.s32.totalorder %s194, 6
      %s198 = scalar_select %p197, %s194, 6
      %s199 = smul.addr %s196, 21
      %s200 = sadd.s32 %s198, %s199
      %s201 = smul.addr %s200, 8
      %s202 = scalar_lea.vmem %s3, %s201
      %s203 = smul.u32 7, %s21
      %p204 = scmp.lt.s32.totalorder %s20, 0
      %s205 = scalar_select %p204, %s20, 0
      %p206 = scmp.lt.s32.totalorder %s203, 6
      %s207 = scalar_select %p206, %s203, 6
      %s208 = smul.addr %s205, 21
      %s209 = sadd.s32 %s207, %s208
      %s210 = smul.addr %s209, 8
      %s211 = scalar_lea.vmem %s0, %s210
      %s212 = smul.u32 7, %s21
      %s213 = smul.u32 %s19, %s20
      %s214 = smul.u32 %s19, %s21
      %s215 = smul.u32 7, %s214
      %p216 = scmp.lt.s32.totalorder %s213, 0
      %s217 = scalar_select %p216, %s213, 0
      %p218 = scmp.lt.s32.totalorder %s215, 6
      %s219 = scalar_select %p218, %s215, 6
      %s220 = smul.addr %s217, 21
      %s221 = sadd.s32 %s219, %s220
      %s222 = smul.addr %s221, 8
      %s223 = scalar_lea.vmem %s3, %s222
      %s224 = smul.u32 %s19, %s20
      %s225 = smul.u32 %s19, %s21
      %s226 = smul.u32 7, %s225
      %p227 = scmp.eq.s32.totalorder %s20, 0
      %p228 = scmp.eq.s32.totalorder %s21, 0
      %p229 = pnand %p227, %p228
      %p230 = pneg %p229
      %p231 = scmp.eq.s32.totalorder %s19, 0
      %p232 = pnand %p231, %p230
      %p233 = pneg %p232
      // Predicated region
      $region33: #{batchnorm_relu.1} parent=31 // pred_check
        _
      $region34: #{batchnorm_relu.1} parent=31 // pred_check_branch
        %235 = sbr.rel (%p232) target = $region36
      $region35: #{batchnorm_relu.1} parent=31 // pred_region
        %vm236 = vcmask 7168
        %237 = vst.msk [vmem:[#allocation2] sm:$0xff] %vm236, 0.0
        %238 = vst.msk [vmem:[#allocation2 + $0x8] sm:$0xff] %vm236, 0.0
        %239 = vst.msk [vmem:[#allocation2 + $0x10] sm:$0xff] %vm236, 0.0
        %240 = vst.msk [vmem:[#allocation3] sm:$0xff] %vm236, 0.0
        %241 = vst.msk [vmem:[#allocation3 + $0x8] sm:$0xff] %vm236, 0.0
        %242 = vst.msk [vmem:[#allocation3 + $0x10] sm:$0xff] %vm236, 0.0
      $region36: #{batchnorm_relu.1} parent=31 // pred_fallthru
        _
      // Predicated region
      $region37: #{batchnorm_relu.1} parent=31 // pred_check
        %p243 = pneg %p231
      $region38: #{batchnorm_relu.1} parent=31 // pred_check_branch
        %245 = sbr.rel (%p243) target = $region40
      $region39: #{batchnorm_relu.1} parent=31 // pred_region
        %v246 = vld [vmem:[%s211] sm:$0xff]
        %v247 = vld [vmem:[%s211 + $0x8] sm:$0xff]
        %v248 = vld [vmem:[%s211 + $0x10] sm:$0xff]
        %v249 = vld [vmem:[%s211 + $0x18] sm:$0xff]
        %v250 = vld [vmem:[%s211 + $0x20] sm:$0xff]
        %v251 = vld [vmem:[%s211 + $0x28] sm:$0xff]
        %v252 = vld [vmem:[%s211 + $0x30] sm:$0xff]
        %v253 = vld [vmem:[%s211 + $0x38] sm:$0xff]
        %v254 = vld [vmem:[%s211 + $0x40] sm:$0xff]
        %v255 = vld [vmem:[%s211 + $0x48] sm:$0xff]
        %v256 = vld [vmem:[%s211 + $0x50] sm:$0xff]
        %v257 = vld [vmem:[%s211 + $0x58] sm:$0xff]
        %v258 = vld [vmem:[%s211 + $0x60] sm:$0xff]
        %v259 = vld [vmem:[%s211 + $0x68] sm:$0xff]
        %v260 = vld [vmem:[%s211 + $0x70] sm:$0xff]
        %v261 = vld [vmem:[%s211 + $0x78] sm:$0xff]
        %v262 = vld [vmem:[%s211 + $0x80] sm:$0xff]
        %v263 = vld [vmem:[%s211 + $0x88] sm:$0xff]
        %v264 = vld [vmem:[%s211 + $0x90] sm:$0xff]
        %v265 = vld [vmem:[%s211 + $0x98] sm:$0xff]
        %v266 = vld [vmem:[%s211 + $0xa0] sm:$0xff]
        %v267 = vld [vmem:[#allocation2] sm:$0xff]
        %v268 = vld [vmem:[#allocation2 + $0x8] sm:$0xff]
        %v269 = vld [vmem:[#allocation2 + $0x10] sm:$0xff]
        %v270 = vadd.f32 %v246, %v247
        %v271 = vadd.f32 %v270, %v248
        %v272 = vadd.f32 %v271, %v249
        %v273 = vadd.f32 %v272, %v250
        %v274 = vadd.f32 %v273, %v251
        %v275 = vadd.f32 %v274, %v252
        %276 = vadd.xlane.f32.xlu0 %v275
        %v277 = vpop.xlane.xlu0 %276
        %v278 = vadd.f32 %v253, %v254
        %v279 = vadd.f32 %v278, %v255
        %v280 = vadd.f32 %v279, %v256
        %v281 = vadd.f32 %v280, %v257
        %v282 = vadd.f32 %v281, %v258
        %v283 = vadd.f32 %v282, %v259
        %284 = vadd.xlane.f32.xlu0 %v283
        %v285 = vpop.xlane.xlu0 %284
        %v286 = vadd.f32 %v260, %v261
        %v287 = vadd.f32 %v286, %v262
        %v288 = vadd.f32 %v287, %v263
        %v289 = vadd.f32 %v288, %v264
        %v290 = vadd.f32 %v289, %v265
        %v291 = vadd.f32 %v290, %v266
        %292 = vadd.xlane.f32.xlu0 %v291
        %v293 = vpop.xlane.xlu0 %292
        %v294 = vadd.f32 %v267, %v277
        %v295 = vadd.f32 %v268, %v285
        %v296 = vadd.f32 %v269, %v293
        %vm297 = vcmask 7168
        %298 = vst.msk [vmem:[#allocation2] sm:$0xff] %vm297, %v294
        %299 = vst.msk [vmem:[#allocation2 + $0x8] sm:$0xff] %vm297, %v295
        %300 = vst.msk [vmem:[#allocation2 + $0x10] sm:$0xff] %vm297, %v296
        %v301 = vld [vmem:[#allocation3] sm:$0xff]
        %v302 = vld [vmem:[#allocation3 + $0x8] sm:$0xff]
        %v303 = vld [vmem:[#allocation3 + $0x10] sm:$0xff]
        %v304 = vmul.f32 %v246, %v246
        %v305 = vmul.f32 %v247, %v247
        %v306 = vmul.f32 %v248, %v248
        %v307 = vmul.f32 %v249, %v249
        %v308 = vmul.f32 %v250, %v250
        %v309 = vmul.f32 %v251, %v251
        %v310 = vmul.f32 %v252, %v252
        %v311 = vmul.f32 %v253, %v253
        %v312 = vmul.f32 %v254, %v254
        %v313 = vmul.f32 %v255, %v255
        %v314 = vmul.f32 %v256, %v256
        %v315 = vmul.f32 %v257, %v257
        %v316 = vmul.f32 %v258, %v258
        %v317 = vmul.f32 %v259, %v259
        %v318 = vmul.f32 %v260, %v260
        %v319 = vmul.f32 %v261, %v261
        %v320 = vmul.f32 %v262, %v262
        %v321 = vmul.f32 %v263, %v263
        %v322 = vmul.f32 %v264, %v264
        %v323 = vmul.f32 %v265, %v265
        %v324 = vmul.f32 %v266, %v266
        %v325 = vadd.f32 %v304, %v305
        %v326 = vadd.f32 %v325, %v306
        %v327 = vadd.f32 %v326, %v307
        %v328 = vadd.f32 %v327, %v308
        %v329 = vadd.f32 %v328, %v309
        %v330 = vadd.f32 %v329, %v310
        %331 = vadd.xlane.f32.xlu0 %v330
        %v332 = vpop.xlane.xlu0 %331
        %v333 = vadd.f32 %v311, %v312
        %v334 = vadd.f32 %v333, %v313
        %v335 = vadd.f32 %v334, %v314
        %v336 = vadd.f32 %v335, %v315
        %v337 = vadd.f32 %v336, %v316
        %v338 = vadd.f32 %v337, %v317
        %339 = vadd.xlane.f32.xlu0 %v338
        %v340 = vpop.xlane.xlu0 %339
        %v341 = vadd.f32 %v318, %v319
        %v342 = vadd.f32 %v341, %v320
        %v343 = vadd.f32 %v342, %v321
        %v344 = vadd.f32 %v343, %v322
        %v345 = vadd.f32 %v344, %v323
        %v346 = vadd.f32 %v345, %v324
        %347 = vadd.xlane.f32.xlu0 %v346
        %v348 = vpop.xlane.xlu0 %347
        %v349 = vadd.f32 %v301, %v332
        %v350 = vadd.f32 %v302, %v340
        %v351 = vadd.f32 %v303, %v348
        %352 = vst.msk [vmem:[#allocation3] sm:$0xff] %vm297, %v349
        %353 = vst.msk [vmem:[#allocation3 + $0x8] sm:$0xff] %vm297, %v350
        %354 = vst.msk [vmem:[#allocation3 + $0x10] sm:$0xff] %vm297, %v351
      $region40: #{batchnorm_relu.1} parent=31 // pred_fallthru
        _
      %p355 = scmp.eq.s32.totalorder %s19, 1
      %p356 = pnand %p355, %p230
      %p357 = pneg %p356
      // Predicated region
      $region41: #{batchnorm_relu.1} parent=31 // pred_check
        _
      $region42: #{batchnorm_relu.1} parent=31 // pred_check_branch
        %359 = sbr.rel (%p356) target = $region44
      $region43: #{batchnorm_relu.1} parent=31 // pred_region
        %v360 = vld [vmem:[#allocation2] sm:$0xff]
        %v361 = vld [vmem:[#allocation2 + $0x8] sm:$0xff]
        %v362 = vld [vmem:[#allocation2 + $0x10] sm:$0xff]
        %v363 = vmul.f32 %v360, 0.0012755102
        %v364 = vmul.f32 %v361, 0.0012755102
        %v365 = vmul.f32 %v362, 0.0012755102
        %v366 = vld [vmem:[#allocation3] sm:$0xff]
        %v367 = vld [vmem:[#allocation3 + $0x8] sm:$0xff]
        %v368 = vld [vmem:[#allocation3 + $0x10] sm:$0xff]
        %v369 = vmul.f32 %v366, 0.0012755102
        %v370 = vmul.f32 %v367, 0.0012755102
        %v371 = vmul.f32 %v368, 0.0012755102
        %v372 = vmul.f32 %v363, %v363
        %v373 = vmul.f32 %v364, %v364
        %v374 = vmul.f32 %v365, %v365
        %v375 = vsub.f32 %v369, %v372
        %v376 = vsub.f32 %v370, %v373
        %v377 = vsub.f32 %v371, %v374
        %v378 = vmax.f32 %v375, 0.0
        %v379 = vmax.f32 %v376, 0.0
        %v380 = vmax.f32 %v377, 0.0
        %v381 = vadd.f32 %v378, 1e-05
        %v382 = vadd.f32 %v379, 1e-05
        %v383 = vadd.f32 %v380, 1e-05
        %v384 = vrsqrt.pop %v381
        %v385 = vrsqrt.pop %v382
        %v386 = vrsqrt.pop %v383
        %v387 = vld [vmem:[%s1] sm:$0xff]
        %v388 = vld [vmem:[%s1 + $0x8] sm:$0xff]
        %v389 = vld [vmem:[%s1 + $0x10] sm:$0xff]
        %v390 = vmul.f32 %v384, %v387
        %v391 = vmul.f32 %v385, %v388
        %v392 = vmul.f32 %v386, %v389
        %vm393 = vcmask 7168
        %394 = vst.msk [vmem:[#allocation4] sm:$0xff] %vm393, %v390
        %395 = vst.msk [vmem:[#allocation4 + $0x8] sm:$0xff] %vm393, %v391
        %396 = vst.msk [vmem:[#allocation4 + $0x10] sm:$0xff] %vm393, %v392
        %v397 = vld [vmem:[%s2] sm:$0xff]
        %v398 = vld [vmem:[%s2 + $0x8] sm:$0xff]
        %v399 = vld [vmem:[%s2 + $0x10] sm:$0xff]
        %v400 = vmul.f32 %v363, %v390
        %v401 = vmul.f32 %v364, %v391
        %v402 = vmul.f32 %v365, %v392
        %v403 = vsub.f32 %v397, %v400
        %v404 = vsub.f32 %v398, %v401
        %v405 = vsub.f32 %v399, %v402
        %406 = vst.msk [vmem:[#allocation5] sm:$0xff] %vm393, %v403
        %407 = vst.msk [vmem:[#allocation5 + $0x8] sm:$0xff] %vm393, %v404
        %408 = vst.msk [vmem:[#allocation5 + $0x10] sm:$0xff] %vm393, %v405
      $region44: #{batchnorm_relu.1} parent=31 // pred_fallthru
        _
      // Predicated region
      $region45: #{batchnorm_relu.1} parent=31 // pred_check
        %p409 = pneg %p355
      $region46: #{batchnorm_relu.1} parent=31 // pred_check_branch
        %411 = sbr.rel (%p409) target = $region48
      $region47: #{batchnorm_relu.1} parent=31 // pred_region
        %v412 = vld [vmem:[%s211] sm:$0xff]
        %v413 = vld [vmem:[%s211 + $0x8] sm:$0xff]
        %v414 = vld [vmem:[%s211 + $0x10] sm:$0xff]
        %v415 = vld [vmem:[%s211 + $0x18] sm:$0xff]
        %v416 = vld [vmem:[%s211 + $0x20] sm:$0xff]
        %v417 = vld [vmem:[%s211 + $0x28] sm:$0xff]
        %v418 = vld [vmem:[%s211 + $0x30] sm:$0xff]
        %v419 = vld [vmem:[%s211 + $0x38] sm:$0xff]
        %v420 = vld [vmem:[%s211 + $0x40] sm:$0xff]
        %v421 = vld [vmem:[%s211 + $0x48] sm:$0xff]
        %v422 = vld [vmem:[%s211 + $0x50] sm:$0xff]
        %v423 = vld [vmem:[%s211 + $0x58] sm:$0xff]
        %v424 = vld [vmem:[%s211 + $0x60] sm:$0xff]
        %v425 = vld [vmem:[%s211 + $0x68] sm:$0xff]
        %v426 = vld [vmem:[%s211 + $0x70] sm:$0xff]
        %v427 = vld [vmem:[%s211 + $0x78] sm:$0xff]
        %v428 = vld [vmem:[%s211 + $0x80] sm:$0xff]
        %v429 = vld [vmem:[%s211 + $0x88] sm:$0xff]
        %v430 = vld [vmem:[%s211 + $0x90] sm:$0xff]
        %v431 = vld [vmem:[%s211 + $0x98] sm:$0xff]
        %v432 = vld [vmem:[%s211 + $0xa0] sm:$0xff]
        %v433 = vld [vmem:[#allocation4] sm:$0xff]
        %v434 = vld [vmem:[#allocation4 + $0x8] sm:$0xff]
        %v435 = vld [vmem:[#allocation4 + $0x10] sm:$0xff]
        %437 = vset.pattern.permute.xlu0 0
        %438 = vperm.xlu0 %437, %v433
        %v439 = vpop.permute.xlu0 %438
        %442 = vset.pattern.permute.xlu0 0
        %443 = vperm.xlu0 %442, %v434
        %v444 = vpop.permute.xlu0 %443
        %447 = vset.pattern.permute.xlu0 0
        %448 = vperm.xlu0 %447, %v435
        %v449 = vpop.permute.xlu0 %448
        %v451 = vmul.f32 %v412, %v439
        %v452 = vmul.f32 %v413, %v439
        %v453 = vmul.f32 %v414, %v439
        %v454 = vmul.f32 %v415, %v439
        %v455 = vmul.f32 %v416, %v439
        %v456 = vmul.f32 %v417, %v439
        %v457 = vmul.f32 %v418, %v439
        %v458 = vmul.f32 %v419, %v444
        %v459 = vmul.f32 %v420, %v444
        %v460 = vmul.f32 %v421, %v444
        %v461 = vmul.f32 %v422, %v444
        %v462 = vmul.f32 %v423, %v444
        %v463 = vmul.f32 %v424, %v444
        %v464 = vmul.f32 %v425, %v444
        %v465 = vmul.f32 %v426, %v449
        %v466 = vmul.f32 %v427, %v449
        %v467 = vmul.f32 %v428, %v449
        %v468 = vmul.f32 %v429, %v449
        %v469 = vmul.f32 %v430, %v449
        %v470 = vmul.f32 %v431, %v449
        %v471 = vmul.f32 %v432, %v449
        %v472 = vld [vmem:[#allocation5] sm:$0xff]
        %v473 = vld [vmem:[#allocation5 + $0x8] sm:$0xff]
        %v474 = vld [vmem:[#allocation5 + $0x10] sm:$0xff]
        %476 = vset.pattern.permute.xlu0 0
        %477 = vperm.xlu0 %476, %v472
        %v478 = vpop.permute.xlu0 %477
        %481 = vset.pattern.permute.xlu0 0
        %482 = vperm.xlu0 %481, %v473
        %v483 = vpop.permute.xlu0 %482
        %486 = vset.pattern.permute.xlu0 0
        %487 = vperm.xlu0 %486, %v474
        %v488 = vpop.permute.xlu0 %487
        %v490 = vadd.f32 %v451, %v478
        %v491 = vadd.f32 %v452, %v478
        %v492 = vadd.f32 %v453, %v478
        %v493 = vadd.f32 %v454, %v478
        %v494 = vadd.f32 %v455, %v478
        %v495 = vadd.f32 %v456, %v478
        %v496 = vadd.f32 %v457, %v478
        %v497 = vadd.f32 %v458, %v483
        %v498 = vadd.f32 %v459, %v483
        %v499 = vadd.f32 %v460, %v483
        %v500 = vadd.f32 %v461, %v483
        %v501 = vadd.f32 %v462, %v483
        %v502 = vadd.f32 %v463, %v483
        %v503 = vadd.f32 %v464, %v483
        %v504 = vadd.f32 %v465, %v488
        %v505 = vadd.f32 %v466, %v488
        %v506 = vadd.f32 %v467, %v488
        %v507 = vadd.f32 %v468, %v488
        %v508 = vadd.f32 %v469, %v488
        %v509 = vadd.f32 %v470, %v488
        %v510 = vadd.f32 %v471, %v488
        %v511 = vmax.f32 %v490, 0.0
        %v512 = vmax.f32 %v491, 0.0
        %v513 = vmax.f32 %v492, 0.0
        %v514 = vmax.f32 %v493, 0.0
        %v515 = vmax.f32 %v494, 0.0
        %v516 = vmax.f32 %v495, 0.0
        %v517 = vmax.f32 %v496, 0.0
        %v518 = vmax.f32 %v497, 0.0
        %v519 = vmax.f32 %v498, 0.0
        %v520 = vmax.f32 %v499, 0.0
        %v521 = vmax.f32 %v500, 0.0
        %v522 = vmax.f32 %v501, 0.0
        %v523 = vmax.f32 %v502, 0.0
        %v524 = vmax.f32 %v503, 0.0
        %v525 = vmax.f32 %v504, 0.0
        %v526 = vmax.f32 %v505, 0.0
        %v527 = vmax.f32 %v506, 0.0
        %v528 = vmax.f32 %v507, 0.0
        %v529 = vmax.f32 %v508, 0.0
        %v530 = vmax.f32 %v509, 0.0
        %v531 = vmax.f32 %v510, 0.0
        %532 = vst [vmem:[%s223] sm:$0xff] %v511
        %533 = vst [vmem:[%s223 + $0x8] sm:$0xff] %v512
        %534 = vst [vmem:[%s223 + $0x10] sm:$0xff] %v513
        %535 = vst [vmem:[%s223 + $0x18] sm:$0xff] %v514
        %536 = vst [vmem:[%s223 + $0x20] sm:$0xff] %v515
        %537 = vst [vmem:[%s223 + $0x28] sm:$0xff] %v516
        %538 = vst [vmem:[%s223 + $0x30] sm:$0xff] %v517
        %539 = vst [vmem:[%s223 + $0x38] sm:$0xff] %v518
        %540 = vst [vmem:[%s223 + $0x40] sm:$0xff] %v519
        %541 = vst [vmem:[%s223 + $0x48] sm:$0xff] %v520
        %542 = vst [vmem:[%s223 + $0x50] sm:$0xff] %v521
        %543 = vst [vmem:[%s223 + $0x58] sm:$0xff] %v522
        %544 = vst [vmem:[%s223 + $0x60] sm:$0xff] %v523
        %545 = vst [vmem:[%s223 + $0x68] sm:$0xff] %v524
        %546 = vst [vmem:[%s223 + $0x70] sm:$0xff] %v525
        %547 = vst [vmem:[%s223 + $0x78] sm:$0xff] %v526
        %548 = vst [vmem:[%s223 + $0x80] sm:$0xff] %v527
        %549 = vst [vmem:[%s223 + $0x88] sm:$0xff] %v528
        %550 = vst [vmem:[%s223 + $0x90] sm:$0xff] %v529
        %551 = vst [vmem:[%s223 + $0x98] sm:$0xff] %v530
        %552 = vst [vmem:[%s223 + $0xa0] sm:$0xff] %v531
      $region48: #{batchnorm_relu.1} parent=31 // pred_fallthru
        _
      %s553 = smul.u32 %s19, %s20
      %s554 = smul.u32 %s19, %s21
      %s555 = smul.u32 7, %s554
      %p556 = scmp.lt.s32.totalorder %s553, 0
      %s557 = scalar_select %p556, %s553, 0
      %p558 = scmp.lt.s32.totalorder %s555, 6
      %s559 = scalar_select %p558, %s555, 6
      %s560 = smul.addr %s557, 21
      %s561 = sadd.s32 %s559, %s560
      %s562 = smul.addr %s561, 8
      %s563 = scalar_lea.vmem %s3, %s562
      // Predicated region
      $region49: #{batchnorm_relu.1} parent=31 // pred_check
        %p564 = pneg %p127
      $region50: #{batchnorm_relu.1} parent=31 // pred_check_branch
        %566 = sbr.rel (%p564) target = $region52
      $region51: #{batchnorm_relu.1} parent=31 // pred_region
        %s567 = smul.u32 %s19, %s20
        %s568 = smul.u32 %s19, %s21
        %s569 = smul.u32 7, %s568
      $region52: #{batchnorm_relu.1} parent=31 // pred_fallthru
        _
    $region32: #{batchnorm_relu.1} parent=5 // pred_fallthru
      _
    %p570 = scmp.le.s32.totalorder 2, %s9
    // Predicated region
    $region53: #{batchnorm_relu.1} parent=5 // pred_check
      %p571 = pneg %p570
    $region54: #{batchnorm_relu.1} parent=5 // pred_check_branch
      %573 = sbr.rel (%p571) target = $region56
    $region55: #{batchnorm_relu.1} parent=5 // pred_region
      %s574 = ssub.s32 %s9, 2
      // Predicated region
      $region57: #{batchnorm_relu.1} parent=55 // pred_check
        %p575 = pneg %p133
      $region58: #{batchnorm_relu.1} parent=55 // pred_check_branch
        %577 = sbr.rel (%p575) target = $region60
      $region59: #{batchnorm_relu.1} parent=55 // pred_region
        %s578 = smul.u32 %s22, %s23
        %s579 = smul.u32 %s22, %s24
        %s580 = smul.u32 7, %s579
        %p581 = scmp.lt.s32.totalorder %s578, 0
        %s582 = scalar_select %p581, %s578, 0
        %p583 = scmp.lt.s32.totalorder %s580, 6
        %s584 = scalar_select %p583, %s580, 6
        %s585 = smul.addr %s582, 21
        %s586 = sadd.s32 %s584, %s585
        %s587 = smul.addr %s586, 8
        %s588 = scalar_lea.vmem %s3, %s587
      $region60: #{batchnorm_relu.1} parent=55 // pred_fallthru
        _
    $region56: #{batchnorm_relu.1} parent=5 // pred_fallthru
      _
  $region6: #{batchnorm_relu.1} parent=0 // loop_footer
    %s13 = sadd.s32 1, %s9
  $region7: #{batchnorm_relu.1} parent=0 // loop_footer_branch
    %8 = sbr.rel target = $region3
  $region8: #{batchnorm_relu.1} parent=0 // loop_exit
    _

</llo_original>
